<compile_context>
chip_gen: v5e
topology: v5e:2x2
jax: 0.10.0
libtpu: 0.0.40
codegen_flags: <defaults>
</compile_context>

<pallas_src>
import functools

import jax
import jax.numpy as jnp
from jax.experimental import pallas as pl
from jax.experimental.pallas import tpu as pltpu


def _pick_tile_rows(B, P, N, D, dtype_bytes=2):
    """Batch-tile rows from a padding-aware, generation-aware VMEM budget.

    Returns (tile_rows, num_tiles, vmem_limit_bytes).
    """
    # Mosaic pads the last two dims of every VMEM block: last dim to 128
    # lanes, second-to-last to 8 (f32) / 16 (bf16) sublanes.
    lane_d = pl.cdiv(D, 128) * 128
    sub = 16 if dtype_bytes == 2 else 8
    pad_p = 1 if P == 1 else pl.cdiv(P, sub) * sub
    pad_n = pl.cdiv(N, sub) * sub
    # bytes per batch row across the q / pos / neg streams, as laid out in VMEM
    row_bytes = (1 + pad_p + pad_n) * lane_d * dtype_bytes
    # TODO(synk): repack negatives lane-dense (last dim a multiple of 128) for
    # small-D deployments; with D<128 every vreg/VMEM byte is lane-underutilized.

    try:
        vmem_bytes = pltpu.get_tpu_info().vmem_capacity_bytes
    except Exception:
        vmem_bytes = 64 * 1024 * 1024  # conservative: v7x has 64 MiB per TC

    # Double-buffered working-set target: ~40% of physical VMEM, capped.
    # (v7x: ~25 MiB, v5e/v6e: 48 MiB.)  Pallas double-buffers each input.
    db_target = min((vmem_bytes * 2) // 5, 48 * 1024 * 1024)
    single_budget = db_target // 2

    tb = single_budget // max(row_bytes, 1)
    tb = max(sub, min(4096, (tb // sub) * sub))

    if B <= tb:
        if B >= 2 * sub:
            # keep >= 2 grid steps so v7x's second TensorCore isn't idle
            tb = min(tb, max(sub, pl.cdiv(pl.cdiv(B, 2), sub) * sub))
        else:
            tb = B  # single full-extent block (satisfies the tiling exemption)

    num_tiles = pl.cdiv(B, tb)

    out_slab_bytes = 8 * 128 * 4
    need = 2 * tb * row_bytes + 2 * out_slab_bytes
    vmem_limit = min(need + (8 << 20), vmem_bytes - (4 << 20))
    vmem_limit = max(vmem_limit, need + (1 << 20))
    return tb, num_tiles, int(vmem_limit)


def _infonce_kernel(q_ref, pos_ref, neg_ref, out_ref, *,
                    inv_temperature, inv_eps, batch, tile_rows):
    i = pl.program_id(0)

    # bf16 storage -> f32 math
    q = q_ref[...].astype(jnp.float32)            # (TB, D)
    neg = neg_ref[...].astype(jnp.float32)        # (TB, N, D)

    q_sq = jnp.sum(q * q, axis=-1, keepdims=True)             # (TB, 1)

    if len(pos_ref.shape) == 2:                   # P == 1 (squeezed in wrapper)
        pos = pos_ref[...].astype(jnp.float32)                 # (TB, D)
        pos_sq = jnp.sum(pos * pos, axis=-1, keepdims=True)    # (TB, 1)
        pos_dot = jnp.sum(q * pos, axis=-1, keepdims=True)     # (TB, 1)
    else:                                          # general P
        pos = pos_ref[...].astype(jnp.float32)                  # (TB, P, D)
        pos_sq = jnp.sum(pos * pos, axis=-1)                     # (TB, P)
        pos_dot = jnp.sum(q[:, None, :] * pos, axis=-1)          # (TB, P)

    neg_sq = jnp.sum(neg * neg, axis=-1)                         # (TB, N)
    neg_dot = jnp.sum(q[:, None, :] * neg, axis=-1)              # (TB, N)

    # cosine sim: dot / max(sqrt(q_sq * x_sq), eps)
    #           = dot * min(rsqrt(q_sq * x_sq), 1/eps); temperature folded in.
    pos_scale = jnp.minimum(jax.lax.rsqrt(q_sq * pos_sq), inv_eps) * inv_temperature
    neg_scale = jnp.minimum(jax.lax.rsqrt(q_sq * neg_sq), inv_eps) * inv_temperature
    pos_logits = pos_dot * pos_scale                             # (TB, P)
    neg_logits = neg_dot * neg_scale                             # (TB, N)

    # label-0 cross entropy via a numerically stable log-sum-exp over [pos|neg]
    if pos_logits.shape[-1] == 1:
        pos_max = pos_logits                                     # skip size-1 reduce
    else:
        pos_max = jnp.max(pos_logits, axis=-1, keepdims=True)
    m = jnp.maximum(pos_max, jnp.max(neg_logits, axis=-1, keepdims=True))  # (TB, 1)
    sumexp = (jnp.sum(jnp.exp(pos_logits - m), axis=-1, keepdims=True)
              + jnp.sum(jnp.exp(neg_logits - m), axis=-1, keepdims=True))   # (TB, 1)
    lse = m + jnp.log(sumexp)                                    # (TB, 1)
    loss_rows = lse - pos_logits[:, 0:1]                         # (TB, 1)

    # Mask rows past the true batch (last partial tile).  Must stay AFTER the
    # LSE and BEFORE the sum so garbage/NaN padding rows never reach the result.
    row = i * tile_rows + jax.lax.broadcasted_iota(jnp.int32, loss_rows.shape, 0)
    loss_rows = jnp.where(row < batch, loss_rows, 0.0)

    # lane-dense per-tile partial sum; the wrapper reduces to the mean
    out_ref[...] = jnp.full(out_ref.shape, jnp.sum(loss_rows), dtype=out_ref.dtype)


def infonce_loss(query_emb, positive_emb, negative_emb, temperature=0.1, eps=1e-8):
    B, D = query_emb.shape
    _, P, _ = positive_emb.shape
    _, N, _ = negative_emb.shape

    # Stream embeddings as bf16 (kernel is HBM-bound); all math is f32 in-kernel.
    store_dtype = jnp.bfloat16
    q = query_emb.astype(store_dtype)
    neg = negative_emb.astype(store_dtype)

    tile_rows, num_tiles, vmem_limit = _pick_tile_rows(
        B, P, N, D, dtype_bytes=jnp.dtype(store_dtype).itemsize)

    in_specs = [pl.BlockSpec((tile_rows, D), lambda i: (i, 0))]
    if P == 1:
        pos = positive_emb.reshape(B, D).astype(store_dtype)
        in_specs.append(pl.BlockSpec((tile_rows, D), lambda i: (i, 0)))
    else:
        pos = positive_emb.astype(store_dtype)
        in_specs.append(pl.BlockSpec((tile_rows, P, D), lambda i: (i, 0, 0)))
    in_specs.append(pl.BlockSpec((tile_rows, N, D), lambda i: (i, 0, 0)))

    kernel = functools.partial(
        _infonce_kernel,
        inv_temperature=float(1.0 / temperature),
        inv_eps=float(1.0 / eps),
        batch=int(B),
        tile_rows=int(tile_rows),
    )

    cost = pl.CostEstimate(
        flops=4 * B * (P + N + 1) * D,
        transcendentals=B * (2 * (P + N) + 1),
        bytes_accessed=2 * (B * D + B * P * D + B * N * D) + 4 * num_tiles * 8 * 128,
    )

    partials = pl.pallas_call(
        kernel,
        out_shape=jax.ShapeDtypeStruct((num_tiles, 8, 128), jnp.float32),
        grid=(num_tiles,),
        in_specs=in_specs,
        out_specs=pl.BlockSpec((1, 8, 128), lambda i: (i, 0, 0)),
        compiler_params=pltpu.CompilerParams(
            dimension_semantics=("parallel",),
            vmem_limit_bytes=vmem_limit,
        ),
        cost_estimate=cost,
    )(q, pos, neg)

    # each tile's partial sum is replicated across its (8,128) slab; take one lane
    return jnp.sum(partials[:, 0, 0]) / B


def _reference_loss(q, pos, neg, temperature=0.1, eps=1e-8):
    # pure-JAX reference mirroring torch F.cosine_similarity + F.cross_entropy
    qn = jnp.sqrt(jnp.sum(q * q, axis=-1, keepdims=True))
    pn = jnp.sqrt(jnp.sum(pos * pos, axis=-1))
    nn_ = jnp.sqrt(jnp.sum(neg * neg, axis=-1))
    pos_sim = jnp.sum(q[:, None, :] * pos, axis=-1) / jnp.maximum(qn * pn, eps)
    neg_sim = jnp.sum(q[:, None, :] * neg, axis=-1) / jnp.maximum(qn * nn_, eps)
    logits = jnp.concatenate([pos_sim, neg_sim], axis=1) / temperature
    logp = jax.nn.log_softmax(logits, axis=-1)
    return -jnp.mean(logp[:, 0])


if __name__ == "__main__":
    B, D, P, N = 8, 32, 1, 7  # query (B,D), 1 positive and 7 negatives per query
    key = jax.random.PRNGKey(0)
    kq, kp, kn = jax.random.split(key, 3)
    query = jax.random.normal(kq, (B, D), dtype=jnp.float32)
    positive = jax.random.normal(kp, (B, P, D), dtype=jnp.float32)
    negative = jax.random.normal(kn, (B, N, D), dtype=jnp.float32)

    loss = jax.jit(infonce_loss)(query, positive, negative)
    jax.block_until_ready(loss)

    # tight check against the same bf16-quantized inputs (kernel math is f32)
    q_q = query.astype(jnp.bfloat16).astype(jnp.float32)
    p_q = positive.astype(jnp.bfloat16).astype(jnp.float32)
    n_q = negative.astype(jnp.bfloat16).astype(jnp.float32)
    ref_q = _reference_loss(q_q, p_q, n_q)
    assert jnp.allclose(loss, ref_q, atol=1e-4, rtol=1e-4), (loss, ref_q)

    # loose sanity check against the full-f32 reference (bf16 input quantization)
    ref_f32 = _reference_loss(query, positive, negative)
    assert jnp.allclose(loss, ref_f32, atol=1e-1, rtol=1e-1), (loss, ref_f32)

    print("KERNEL_OK")
</pallas_src>

<mosaic_0001>
module attributes {stable_mosaic.version = 11 : i64} {
  func.func @_infonce_kernel(%arg0: i32, %arg1: memref<8x32xbf16, #tpu.memory_space<vmem>>, %arg2: memref<8x32xbf16, #tpu.memory_space<vmem>>, %arg3: memref<8x7x32xbf16, #tpu.memory_space<vmem>>, %arg4: memref<1x8x128xf32, #tpu.memory_space<vmem>>) attributes {dimension_semantics = [#tpu.dimension_semantics<parallel>], iteration_bounds = array<i64: 1>, scalar_prefetch = 0 : i64, scratch_operands = 0 : i64, tpu.core_type = #tpu.core_type<tc>, window_params = [{transform_indices = @transform_0, window_bounds = array<i64: 8, 32>}, {transform_indices = @transform_1, window_bounds = array<i64: 8, 32>}, {transform_indices = @transform_2, window_bounds = array<i64: 8, 7, 32>}, {transform_indices = @transform_3, window_bounds = array<i64: 1, 8, 128>}]} {
    %c0 = arith.constant 0 : index
    %c0_0 = arith.constant 0 : index
    %0 = vector.load %arg1[%c0, %c0_0] : memref<8x32xbf16, #tpu.memory_space<vmem>>, vector<8x32xbf16>
    %1 = arith.extf %0 : vector<8x32xbf16> to vector<8x32xf32>
    %c0_1 = arith.constant 0 : index
    %c0_2 = arith.constant 0 : index
    %c0_3 = arith.constant 0 : index
    %2 = vector.load %arg3[%c0_1, %c0_2, %c0_3] : memref<8x7x32xbf16, #tpu.memory_space<vmem>>, vector<8x7x32xbf16>
    %3 = arith.extf %2 : vector<8x7x32xbf16> to vector<8x7x32xf32>
    %4 = arith.mulf %1, %1 : vector<8x32xf32>
    %cst = arith.constant dense<0.000000e+00> : vector<8xf32>
    %5 = vector.multi_reduction <add>, %4, %cst [1] : vector<8x32xf32> to vector<8xf32>
    %6 = vector.shape_cast %5 : vector<8xf32> to vector<8x1xf32>
    %c0_4 = arith.constant 0 : index
    %c0_5 = arith.constant 0 : index
    %7 = vector.load %arg2[%c0_4, %c0_5] : memref<8x32xbf16, #tpu.memory_space<vmem>>, vector<8x32xbf16>
    %8 = arith.extf %7 : vector<8x32xbf16> to vector<8x32xf32>
    %9 = arith.mulf %8, %8 : vector<8x32xf32>
    %cst_6 = arith.constant dense<0.000000e+00> : vector<8xf32>
    %10 = vector.multi_reduction <add>, %9, %cst_6 [1] : vector<8x32xf32> to vector<8xf32>
    %11 = vector.shape_cast %10 : vector<8xf32> to vector<8x1xf32>
    %12 = arith.mulf %1, %8 : vector<8x32xf32>
    %cst_7 = arith.constant dense<0.000000e+00> : vector<8xf32>
    %13 = vector.multi_reduction <add>, %12, %cst_7 [1] : vector<8x32xf32> to vector<8xf32>
    %14 = vector.shape_cast %13 : vector<8xf32> to vector<8x1xf32>
    %15 = arith.mulf %3, %3 : vector<8x7x32xf32>
    %cst_8 = arith.constant dense<0.000000e+00> : vector<8x7xf32>
    %16 = vector.multi_reduction <add>, %15, %cst_8 [2] : vector<8x7x32xf32> to vector<8x7xf32>
    %17 = vector.shape_cast %1 : vector<8x32xf32> to vector<8x1x32xf32>
    %18 = vector.broadcast %17 : vector<8x1x32xf32> to vector<8x7x32xf32>
    %19 = arith.mulf %18, %3 : vector<8x7x32xf32>
    %cst_9 = arith.constant dense<0.000000e+00> : vector<8x7xf32>
    %20 = vector.multi_reduction <add>, %19, %cst_9 [2] : vector<8x7x32xf32> to vector<8x7xf32>
    %21 = arith.mulf %6, %11 : vector<8x1xf32>
    %22 = math.rsqrt %21 : vector<8x1xf32>
    %cst_10 = arith.constant 1.000000e+08 : f32
    %23 = vector.broadcast %cst_10 : f32 to vector<8x1xf32>
    %24 = arith.minimumf %22, %23 : vector<8x1xf32>
    %cst_11 = arith.constant 1.000000e+01 : f32
    %25 = vector.broadcast %cst_11 : f32 to vector<8x1xf32>
    %26 = arith.mulf %24, %25 : vector<8x1xf32>
    %27 = vector.broadcast %6 : vector<8x1xf32> to vector<8x7xf32>
    %28 = arith.mulf %27, %16 : vector<8x7xf32>
    %29 = math.rsqrt %28 : vector<8x7xf32>
    %cst_12 = arith.constant 1.000000e+08 : f32
    %30 = vector.broadcast %cst_12 : f32 to vector<8x7xf32>
    %31 = arith.minimumf %29, %30 : vector<8x7xf32>
    %cst_13 = arith.constant 1.000000e+01 : f32
    %32 = vector.broadcast %cst_13 : f32 to vector<8x7xf32>
    %33 = arith.mulf %31, %32 : vector<8x7xf32>
    %34 = arith.mulf %14, %26 : vector<8x1xf32>
    %35 = arith.mulf %20, %33 : vector<8x7xf32>
    %cst_14 = arith.constant dense<0xFF800000> : vector<8xf32>
    %36 = vector.multi_reduction <maximumf>, %35, %cst_14 [1] : vector<8x7xf32> to vector<8xf32>
    %37 = vector.shape_cast %36 : vector<8xf32> to vector<8x1xf32>
    %38 = arith.maximumf %34, %37 : vector<8x1xf32>
    %39 = arith.subf %34, %38 : vector<8x1xf32>
    %40 = math.exp %39 : vector<8x1xf32>
    %cst_15 = arith.constant dense<0.000000e+00> : vector<8xf32>
    %41 = vector.multi_reduction <add>, %40, %cst_15 [1] : vector<8x1xf32> to vector<8xf32>
    %42 = vector.shape_cast %41 : vector<8xf32> to vector<8x1xf32>
    %43 = vector.broadcast %38 : vector<8x1xf32> to vector<8x7xf32>
    %44 = arith.subf %35, %43 : vector<8x7xf32>
    %45 = math.exp %44 : vector<8x7xf32>
    %cst_16 = arith.constant dense<0.000000e+00> : vector<8xf32>
    %46 = vector.multi_reduction <add>, %45, %cst_16 [1] : vector<8x7xf32> to vector<8xf32>
    %47 = vector.shape_cast %46 : vector<8xf32> to vector<8x1xf32>
    %48 = arith.addf %42, %47 : vector<8x1xf32>
    %49 = math.log %48 : vector<8x1xf32>
    %50 = arith.addf %38, %49 : vector<8x1xf32>
    %51 = arith.subf %50, %34 : vector<8x1xf32>
    %c8_i32 = arith.constant 8 : i32
    %52 = arith.muli %arg0, %c8_i32 : i32
    %53 = tpu.iota {dimensions = array<i32: 0>} : vector<8x1xi32>
    %54 = vector.broadcast %52 : i32 to vector<8x1xi32>
    %55 = arith.addi %54, %53 : vector<8x1xi32>
    %c8_i32_17 = arith.constant 8 : i32
    %56 = vector.broadcast %c8_i32_17 : i32 to vector<8x1xi32>
    %57 = arith.cmpi slt, %55, %56 : vector<8x1xi32>
    %cst_18 = arith.constant 0.000000e+00 : f32
    %58 = vector.broadcast %cst_18 : f32 to vector<8x1xf32>
    %59 = arith.select %57, %51, %58 : vector<8x1xi1>, vector<8x1xf32>
    %60 = vector.shape_cast %59 : vector<8x1xf32> to vector<1x8x1xf32>
    %cst_19 = arith.constant dense<0.000000e+00> : vector<1xf32>
    %61 = vector.multi_reduction <add>, %60, %cst_19 [1, 2] : vector<1x8x1xf32> to vector<1xf32>
    %62 = vector.shape_cast %61 : vector<1xf32> to vector<1x1x1xf32>
    %63 = vector.extract %62[0, 0, 0] : f32 from vector<1x1x1xf32>
    %64 = vector.broadcast %63 : f32 to vector<1x8x128xf32>
    %c0_20 = arith.constant 0 : index
    %c0_21 = arith.constant 0 : index
    %c0_22 = arith.constant 0 : index
    %65 = vector.load %arg4[%c0_20, %c0_21, %c0_22] : memref<1x8x128xf32, #tpu.memory_space<vmem>>, vector<1x8x128xf32>
    tpu.vector_store %arg4[%c0_20, %c0_21, %c0_22], %64 {strides = array<i32>} : memref<1x8x128xf32, #tpu.memory_space<vmem>>, vector<1x8x128xf32>,
    return
  }
  func.func @transform_0(%arg0: i32) -> (i32, i32) {
    %c0_i32 = arith.constant 0 : i32
    %c0_i32_0 = arith.constant 0 : i32
    return %arg0, %c0_i32 : i32, i32
  }
  func.func @transform_1(%arg0: i32) -> (i32, i32) {
    %c0_i32 = arith.constant 0 : i32
    %c0_i32_0 = arith.constant 0 : i32
    return %arg0, %c0_i32 : i32, i32
  }
  func.func @transform_2(%arg0: i32) -> (i32, i32, i32) {
    %c0_i32 = arith.constant 0 : i32
    %c0_i32_0 = arith.constant 0 : i32
    %c0_i32_1 = arith.constant 0 : i32
    return %arg0, %c0_i32, %c0_i32_0 : i32, i32, i32
  }
  func.func @transform_3(%arg0: i32) -> (i32, i32, i32) {
    %c0_i32 = arith.constant 0 : i32
    %c0_i32_0 = arith.constant 0 : i32
    %c0_i32_1 = arith.constant 0 : i32
    return %arg0, %c0_i32, %c0_i32_0 : i32, i32, i32
  }
}

</mosaic_0001>

<llo_original>
// kernel: infonce_loss.1
$region0: #{infonce_loss.1}
  #allocation0 [shape = 'u32[]', space=smem, size = 0x4, offset = 0x4, fixed_abs, tag = 'smem constant byte address 0x4 - core index']
  #allocation1 [shape = 'u32[72,128]{1,0:T(1,128)}', space=vmem, size = 0x9000, scoped, tag = 'internal scratch']
  %s0 = inlined_call_operand.vmem [shape: bf16[8,32], index: 0, kind: input, shape index: {}]
  %s1 = inlined_call_operand.vmem [shape: bf16[8,32], index: 1, kind: input, shape index: {}]
  %s2 = inlined_call_operand.vmem [shape: bf16[8,7,32], index: 2, kind: input, shape index: {}]
  %s3 = inlined_call_operand.vmem [shape: f32[1,8,128], index: 3, kind: output, shape index: {}]
  %s4 = sld [smem:[#allocation0]]
  $region22: #{infonce_loss.1} parent=0
    _
  %s6 = ssub.s32 1, %s4
  %s7 = scalar_select 0, %s6, %s4
  // Predicated region
  $region2: #{infonce_loss.1} parent=0 // pred_check
    _
  $region3: #{infonce_loss.1} parent=0 // pred_check_branch
    %9 = sbr.rel (0) target = $region5
  $region4: #{infonce_loss.1} parent=0 // pred_region
    _
  $region5: #{infonce_loss.1} parent=0 // pred_fallthru
    _
  // Predicated region
  $region6: #{infonce_loss.1} parent=0 // pred_check
    _
  $region7: #{infonce_loss.1} parent=0 // pred_check_branch
    %11 = sbr.rel (0) target = $region9
  $region8: #{infonce_loss.1} parent=0 // pred_region
    _
  $region9: #{infonce_loss.1} parent=0 // pred_fallthru
    _
  // Predicated region
  $region10: #{infonce_loss.1} parent=0 // pred_check
    _
  $region11: #{infonce_loss.1} parent=0 // pred_check_branch
    %13 = sbr.rel (0) target = $region13
  $region12: #{infonce_loss.1} parent=0 // pred_region
    _
  $region13: #{infonce_loss.1} parent=0 // pred_fallthru
    _
  %v14 = vld [vmem:[%s0] sm:$0xf]
  %v15 = vunpack.c.l.bf16 %v14
  %v16 = vld [vmem:[%s2] sm:$0xf]
  %v17 = vld [vmem:[%s2 + $0x4] sm:$0xf]
  %v18 = vld [vmem:[%s2 + $0x8] sm:$0xf]
  %v19 = vld [vmem:[%s2 + $0xc] sm:$0xf]
  %v20 = vld [vmem:[%s2 + $0x10] sm:$0xf]
  %v21 = vld [vmem:[%s2 + $0x14] sm:$0xf]
  %v22 = vld [vmem:[%s2 + $0x18] sm:$0xf]
  %v23 = vld [vmem:[%s2 + $0x1c] sm:$0xf]
  %v24 = vunpack.c.l.bf16 %v16
  %v25 = vunpack.c.l.bf16 %v17
  %v26 = vunpack.c.l.bf16 %v18
  %v27 = vunpack.c.l.bf16 %v19
  %v28 = vunpack.c.l.bf16 %v20
  %v29 = vunpack.c.l.bf16 %v21
  %v30 = vunpack.c.l.bf16 %v22
  %v31 = vunpack.c.l.bf16 %v23
  %v32 = vmul.f32 %v15, %v15
  %vm33 = vcmask 261120
  %v34 = vsel %vm33, %v32, 0.0
  %35 = vadd.xlane.f32.xlu0 %v34
  %v36 = vpop.xlane.xlu0 %35
  %v37 = vld [vmem:[%s1] sm:$0xf]
  %v38 = vunpack.c.l.bf16 %v37
  %v39 = vmul.f32 %v38, %v38
  %v40 = vsel %vm33, %v39, 0.0
  %41 = vadd.xlane.f32.xlu0 %v40
  %v42 = vpop.xlane.xlu0 %41
  %v43 = vmul.f32 %v15, %v38
  %v44 = vsel %vm33, %v43, 0.0
  %45 = vadd.xlane.f32.xlu0 %v44
  %v46 = vpop.xlane.xlu0 %45
  %v47 = vmul.f32 %v24, %v24
  %v48 = vmul.f32 %v25, %v25
  %v49 = vmul.f32 %v26, %v26
  %v50 = vmul.f32 %v27, %v27
  %v51 = vmul.f32 %v28, %v28
  %v52 = vmul.f32 %v29, %v29
  %v53 = vmul.f32 %v30, %v30
  %v54 = vmul.f32 %v31, %v31
  %vm55 = vcmask 260096
  %v56 = vsel %vm55, %v47, 0.0
  %57 = vadd.xlane.f32.xlu0 %v56
  %v58 = vpop.xlane.xlu0 %57
  %v59 = vsel %vm55, %v48, 0.0
  %60 = vadd.xlane.f32.xlu0 %v59
  %v61 = vpop.xlane.xlu0 %60
  %v62 = vsel %vm55, %v49, 0.0
  %63 = vadd.xlane.f32.xlu0 %v62
  %v64 = vpop.xlane.xlu0 %63
  %v65 = vsel %vm55, %v50, 0.0
  %66 = vadd.xlane.f32.xlu0 %v65
  %v67 = vpop.xlane.xlu0 %66
  %v68 = vsel %vm55, %v51, 0.0
  %69 = vadd.xlane.f32.xlu0 %v68
  %v70 = vpop.xlane.xlu0 %69
  %v71 = vsel %vm55, %v52, 0.0
  %72 = vadd.xlane.f32.xlu0 %v71
  %v73 = vpop.xlane.xlu0 %72
  %v74 = vsel %vm55, %v53, 0.0
  %75 = vadd.xlane.f32.xlu0 %v74
  %v76 = vpop.xlane.xlu0 %75
  %v77 = vsel %vm55, %v54, 0.0
  %78 = vadd.xlane.f32.xlu0 %v77
  %v79 = vpop.xlane.xlu0 %78
  %v81 = vrot.slane %v15, 1
  %v82 = vrot.slane %v15, 2
  %v83 = vrot.slane %v15, 3
  %v84 = vrot.slane %v15, 4
  %v85 = vrot.slane %v15, 5
  %v86 = vrot.slane %v15, 6
  %v87 = vrot.slane %v15, 7
  %v88 = vperm.slane %v15, 0
  %v89 = vperm.slane %v81, 0
  %v90 = vperm.slane %v82, 0
  %v91 = vperm.slane %v83, 0
  %v92 = vperm.slane %v84, 0
  %v93 = vperm.slane %v85, 0
  %v94 = vperm.slane %v86, 0
  %v95 = vperm.slane %v87, 0
  %v104 = vmul.f32 %v88, %v24
  %v105 = vmul.f32 %v89, %v25
  %v106 = vmul.f32 %v90, %v26
  %v107 = vmul.f32 %v91, %v27
  %v108 = vmul.f32 %v92, %v28
  %v109 = vmul.f32 %v93, %v29
  %v110 = vmul.f32 %v94, %v30
  %v111 = vmul.f32 %v95, %v31
  %v112 = vsel %vm55, %v104, 0.0
  %113 = vadd.xlane.f32.xlu0 %v112
  %v114 = vpop.xlane.xlu0 %113
  %v115 = vsel %vm55, %v105, 0.0
  %116 = vadd.xlane.f32.xlu0 %v115
  %v117 = vpop.xlane.xlu0 %116
  %v118 = vsel %vm55, %v106, 0.0
  %119 = vadd.xlane.f32.xlu0 %v118
  %v120 = vpop.xlane.xlu0 %119
  %v121 = vsel %vm55, %v107, 0.0
  %122 = vadd.xlane.f32.xlu0 %v121
  %v123 = vpop.xlane.xlu0 %122
  %v124 = vsel %vm55, %v108, 0.0
  %125 = vadd.xlane.f32.xlu0 %v124
  %v126 = vpop.xlane.xlu0 %125
  %v127 = vsel %vm55, %v109, 0.0
  %128 = vadd.xlane.f32.xlu0 %v127
  %v129 = vpop.xlane.xlu0 %128
  %v130 = vsel %vm55, %v110, 0.0
  %131 = vadd.xlane.f32.xlu0 %v130
  %v132 = vpop.xlane.xlu0 %131
  %v133 = vsel %vm55, %v111, 0.0
  %134 = vadd.xlane.f32.xlu0 %v133
  %v135 = vpop.xlane.xlu0 %134
  %v136 = vmul.f32 %v36, %v42
  %v137 = vrsqrt.pop %v136
  %v138 = vmul.f32 %v137, %v136
  %v139 = vmul.f32 %v138, %v137
  %v140 = vmul.f32 0.5, %v139
  %v141 = vsub.f32 1.5, %v140
  %v142 = vmul.f32 %v137, %v141
  %vm143 = vweird.f32 %v136
  %vm144 = vweird.f32 %v137
  %vm145 = vmor %vm143, %vm144
  %v146 = vsel %vm145, %v137, %v142
  %v147 = vmin.f32 %v146, 1e+08
  %v148 = vmul.f32 %v147, 10.0
  %v157 = vlaneseq
  %v158 = vand.u32 %v157, 127
  %v159 = vperm.slane %v58, %v158
  %v160 = vperm.slane %v61, %v158
  %v161 = vperm.slane %v64, %v158
  %v162 = vperm.slane %v67, %v158
  %v163 = vperm.slane %v70, %v158
  %v164 = vperm.slane %v73, %v158
  %v165 = vperm.slane %v76, %v158
  %v166 = vperm.slane %v79, %v158
  %vm167 = vcmask 1041409
  %v168 = vsel %vm167, %v160, %v159
  %vm169 = vcmask 1042434
  %v170 = vsel %vm169, %v161, %v168
  %vm171 = vcmask 1043459
  %v172 = vsel %vm171, %v162, %v170
  %vm173 = vcmask 1044484
  %v174 = vsel %vm173, %v163, %v172
  %vm175 = vcmask 1045509
  %v176 = vsel %vm175, %v164, %v174
  %vm177 = vcmask 1046534
  %v178 = vsel %vm177, %v165, %v176
  %vm179 = vcmask 1047559
  %v180 = vsel %vm179, %v166, %v178
  %v182 = vmul.f32 %v36, %v180
  %v183 = vrsqrt.pop %v182
  %v184 = vmul.f32 %v183, %v182
  %v185 = vmul.f32 %v184, %v183
  %v186 = vmul.f32 0.5, %v185
  %v187 = vsub.f32 1.5, %v186
  %v188 = vmul.f32 %v183, %v187
  %vm189 = vweird.f32 %v182
  %vm190 = vweird.f32 %v183
  %vm191 = vmor %vm189, %vm190
  %v192 = vsel %vm191, %v183, %v188
  %v193 = vmin.f32 %v192, 1e+08
  %v194 = vmul.f32 %v193, 10.0
  %v195 = vmul.f32 %v46, %v148
  %v197 = vperm.slane %v194, 0
  %v198 = vlaneseq
  %v199 = vshrl.u32 %v198, 7
  %201 = vset.pattern.permute.xlu0 %v199
  %202 = vperm.xlu0 %201, %v197
  %v203 = vpop.permute.xlu0 %202
  %v204 = vperm.slane %v194, 1
  %v205 = vlaneseq
  %v206 = vshrl.u32 %v205, 7
  %208 = vset.pattern.permute.xlu0 %v206
  %209 = vperm.xlu0 %208, %v204
  %v210 = vpop.permute.xlu0 %209
  %v211 = vperm.slane %v194, 2
  %v212 = vlaneseq
  %v213 = vshrl.u32 %v212, 7
  %215 = vset.pattern.permute.xlu0 %v213
  %216 = vperm.xlu0 %215, %v211
  %v217 = vpop.permute.xlu0 %216
  %v218 = vperm.slane %v194, 3
  %v219 = vlaneseq
  %v220 = vshrl.u32 %v219, 7
  %222 = vset.pattern.permute.xlu0 %v220
  %223 = vperm.xlu0 %222, %v218
  %v224 = vpop.permute.xlu0 %223
  %v225 = vperm.slane %v194, 4
  %v226 = vlaneseq
  %v227 = vshrl.u32 %v226, 7
  %229 = vset.pattern.permute.xlu0 %v227
  %230 = vperm.xlu0 %229, %v225
  %v231 = vpop.permute.xlu0 %230
  %v232 = vperm.slane %v194, 5
  %v233 = vlaneseq
  %v234 = vshrl.u32 %v233, 7
  %236 = vset.pattern.permute.xlu0 %v234
  %237 = vperm.xlu0 %236, %v232
  %v238 = vpop.permute.xlu0 %237
  %v239 = vperm.slane %v194, 6
  %v240 = vlaneseq
  %v241 = vshrl.u32 %v240, 7
  %243 = vset.pattern.permute.xlu0 %v241
  %244 = vperm.xlu0 %243, %v239
  %v245 = vpop.permute.xlu0 %244
  %v246 = vperm.slane %v194, 7
  %v247 = vlaneseq
  %v248 = vshrl.u32 %v247, 7
  %250 = vset.pattern.permute.xlu0 %v248
  %251 = vperm.xlu0 %250, %v246
  %v252 = vpop.permute.xlu0 %251
  %v261 = vmul.f32 %v114, %v203
  %v262 = vmul.f32 %v117, %v210
  %v263 = vmul.f32 %v120, %v217
  %v264 = vmul.f32 %v123, %v224
  %v265 = vmul.f32 %v126, %v231
  %v266 = vmul.f32 %v129, %v238
  %v267 = vmul.f32 %v132, %v245
  %v268 = vmul.f32 %v135, %v252
  %277 = vset.pattern.permute.xlu0 0
  %278 = vperm.xlu0 %277, %v261
  %v279 = vpop.permute.xlu0 %278
  %280 = vset.pattern.permute.xlu0 0
  %281 = vperm.xlu0 %280, %v262
  %v282 = vpop.permute.xlu0 %281
  %283 = vset.pattern.permute.xlu0 0
  %284 = vperm.xlu0 %283, %v263
  %v285 = vpop.permute.xlu0 %284
  %286 = vset.pattern.permute.xlu0 0
  %287 = vperm.xlu0 %286, %v264
  %v288 = vpop.permute.xlu0 %287
  %289 = vset.pattern.permute.xlu0 0
  %290 = vperm.xlu0 %289, %v265
  %v291 = vpop.permute.xlu0 %290
  %292 = vset.pattern.permute.xlu0 0
  %293 = vperm.xlu0 %292, %v266
  %v294 = vpop.permute.xlu0 %293
  %295 = vset.pattern.permute.xlu0 0
  %296 = vperm.xlu0 %295, %v267
  %v297 = vpop.permute.xlu0 %296
  %298 = vset.pattern.permute.xlu0 0
  %299 = vperm.xlu0 %298, %v268
  %v300 = vpop.permute.xlu0 %299
  %v301 = vperm.slane %v279, %v158
  %v302 = vperm.slane %v282, %v158
  %v303 = vperm.slane %v285, %v158
  %v304 = vperm.slane %v288, %v158
  %v305 = vperm.slane %v291, %v158
  %v306 = vperm.slane %v294, %v158
  %v307 = vperm.slane %v297, %v158
  %v308 = vperm.slane %v300, %v158
  %v309 = vsel %vm167, %v302, %v301
  %v310 = vsel %vm169, %v303, %v309
  %v311 = vsel %vm171, %v304, %v310
  %v312 = vsel %vm173, %v305, %v311
  %v313 = vsel %vm175, %v306, %v312
  %v314 = vsel %vm177, %v307, %v313
  %v315 = vsel %vm179, %v308, %v314
  %vm317 = vcmask 56320
  %v318 = vsel %vm317, %v315, -inf
  %319 = vmax.xlane.f32.xlu0 %v318
  %v320 = vpop.xlane.xlu0 %319
  %v321 = vmax.f32 %v195, %v320
  %v322 = vsub.f32 %v195, %v321
  %v323 = vmul.f32 %v322, 1.442695
  %v324 = vpow.pop %v323
  %v325 = vadd.f32 %v324, 0.0
  %v327 = vperm.slane %v321, 0
  %v328 = vperm.slane %v321, 1
  %v329 = vperm.slane %v321, 2
  %v330 = vperm.slane %v321, 3
  %v331 = vperm.slane %v321, 4
  %v332 = vperm.slane %v321, 5
  %v333 = vperm.slane %v321, 6
  %v334 = vperm.slane %v321, 7
  %v343 = vsub.f32 %v261, %v327
  %v344 = vsub.f32 %v262, %v328
  %v345 = vsub.f32 %v263, %v329
  %v346 = vsub.f32 %v264, %v330
  %v347 = vsub.f32 %v265, %v331
  %v348 = vsub.f32 %v266, %v332
  %v349 = vsub.f32 %v267, %v333
  %v350 = vsub.f32 %v268, %v334
  %v351 = vmul.f32 %v343, 1.442695
  %v352 = vpow.pop %v351
  %v353 = vmul.f32 %v344, 1.442695
  %v354 = vpow.pop %v353
  %v355 = vmul.f32 %v345, 1.442695
  %v356 = vpow.pop %v355
  %v357 = vmul.f32 %v346, 1.442695
  %v358 = vpow.pop %v357
  %v359 = vmul.f32 %v347, 1.442695
  %v360 = vpow.pop %v359
  %v361 = vmul.f32 %v348, 1.442695
  %v362 = vpow.pop %v361
  %v363 = vmul.f32 %v349, 1.442695
  %v364 = vpow.pop %v363
  %v365 = vmul.f32 %v350, 1.442695
  %v366 = vpow.pop %v365
  %375 = vset.pattern.permute.xlu0 0
  %376 = vperm.xlu0 %375, %v352
  %v377 = vpop.permute.xlu0 %376
  %378 = vset.pattern.permute.xlu0 0
  %379 = vperm.xlu0 %378, %v354
  %v380 = vpop.permute.xlu0 %379
  %381 = vset.pattern.permute.xlu0 0
  %382 = vperm.xlu0 %381, %v356
  %v383 = vpop.permute.xlu0 %382
  %384 = vset.pattern.permute.xlu0 0
  %385 = vperm.xlu0 %384, %v358
  %v386 = vpop.permute.xlu0 %385
  %387 = vset.pattern.permute.xlu0 0
  %388 = vperm.xlu0 %387, %v360
  %v389 = vpop.permute.xlu0 %388
  %390 = vset.pattern.permute.xlu0 0
  %391 = vperm.xlu0 %390, %v362
  %v392 = vpop.permute.xlu0 %391
  %393 = vset.pattern.permute.xlu0 0
  %394 = vperm.xlu0 %393, %v364
  %v395 = vpop.permute.xlu0 %394
  %396 = vset.pattern.permute.xlu0 0
  %397 = vperm.xlu0 %396, %v366
  %v398 = vpop.permute.xlu0 %397
  %v399 = vperm.slane %v377, %v158
  %v400 = vperm.slane %v380, %v158
  %v401 = vperm.slane %v383, %v158
  %v402 = vperm.slane %v386, %v158
  %v403 = vperm.slane %v389, %v158
  %v404 = vperm.slane %v392, %v158
  %v405 = vperm.slane %v395, %v158
  %v406 = vperm.slane %v398, %v158
  %v407 = vsel %vm167, %v400, %v399
  %v408 = vsel %vm169, %v401, %v407
  %v409 = vsel %vm171, %v402, %v408
  %v410 = vsel %vm173, %v403, %v409
  %v411 = vsel %vm175, %v404, %v410
  %v412 = vsel %vm177, %v405, %v411
  %v413 = vsel %vm179, %v406, %v412
  %v415 = vsel %vm317, %v413, 0.0
  %416 = vadd.xlane.f32.xlu0 %v415
  %v417 = vpop.xlane.xlu0 %416
  %v418 = vadd.f32 %v325, %v417
  %v419 = vlog2.pop %v418
  %v420 = vmul.f32 %v419, 0.6931472
  %v421 = vadd.f32 %v321, %v420
  %v422 = vsub.f32 %v421, %v195
  %s423 = smul.u32 0, 8
  %v424 = vlaneseq
  %v425 = vshrl.u32 %v424, 7
  %v426 = vstv %s423
  %v427 = vadd.s32 %v426, %v425
  %vm428 = vcmp.lt.s32.totalorder %v427, 8
  %v429 = vsel %vm428, %v422, 0.0
  %vm430 = vcmask 7168
  %v431 = vsel %vm430, %v429, 0.0
  %432 = vadd.xlane.f32.xlu0 %v431
  %v433 = vpop.xlane.xlu0 %432
  %v434 = vrot.slane %v433, 4
  %v435 = vadd.f32 %v433, %v434
  %v436 = vrot.slane %v435, 2
  %v437 = vadd.f32 %v435, %v436
  %v438 = vrot.slane %v437, 1
  %v439 = vadd.f32 %v437, %v438
  %s440 = vtos %v439
  %v441 = vstv %s440
  %442 = vst [vmem:[%s3] sm:$0xff] %v441
  // Predicated region
  $region14: #{infonce_loss.1} parent=0 // pred_check
    _
  $region15: #{infonce_loss.1} parent=0 // pred_check_branch
    %444 = sbr.rel (0) target = $region17
  $region16: #{infonce_loss.1} parent=0 // pred_region
    _
  $region17: #{infonce_loss.1} parent=0 // pred_fallthru
    _
  // Predicated region
  $region18: #{infonce_loss.1} parent=0 // pred_check
    _
  $region19: #{infonce_loss.1} parent=0 // pred_check_branch
    %446 = sbr.rel (0) target = $region21
  $region20: #{infonce_loss.1} parent=0 // pred_region
    _
  $region21: #{infonce_loss.1} parent=0 // pred_fallthru
    _

</llo_original>
